<compile_context>
chip_gen: v6e
topology: v6e:2x2x1
jax: 0.10.0
libtpu: 0.0.40
codegen_flags: <defaults>
</compile_context>

<pallas_src>
import math

import jax
import jax.numpy as jnp
from jax.experimental import pallas as pl
from jax.experimental.pallas import tpu as pltpu


_SUBLANE = 8  # f32 sublane count


def _round_up(x, m):
    return (x + m - 1) // m * m


def _choose_tb(B, block_batch):
    """Batch tile: as large as block_batch allows (amortize the ~0.35us fixed
    per-grid-step overhead), but capped near ceil(B/2) so the "parallel" batch
    axis has >=2 steps for v7x's two TensorCores when B is big enough."""
    tb = min(block_batch, B)
    if B > 2 * _SUBLANE:
        tb = min(tb, _round_up(pl.cdiv(B, 2), _SUBLANE))
    if tb < B:
        tb = _round_up(tb, _SUBLANE)      # multi-step: sublane-aligned tile
    return min(tb, B)                     # tb == B -> single full-array block


def _bnn_mlp_kernel(x_ref, w1_ref, b1_ref, w2_ref, b2_ref, w3_ref, b3_ref, mu_ref):
    # bf16 MXU inputs (weights already bf16), f32 accumulation, f32 bias/tanh.
    x = x_ref[...].astype(jnp.bfloat16)
    h1 = jnp.tanh(
        jnp.dot(x, w1_ref[...], preferred_element_type=jnp.float32) + b1_ref[...]
    )
    h2 = jnp.tanh(
        jnp.dot(h1.astype(jnp.bfloat16), w2_ref[...],
                preferred_element_type=jnp.float32) + b2_ref[...]
    )
    mu = jnp.tanh(
        jnp.dot(h2.astype(jnp.bfloat16), w3_ref[...],
                preferred_element_type=jnp.float32) + b3_ref[...]
    )
    mu_ref[...] = mu.astype(mu_ref.dtype)


def bnn_mu_pallas(x, w1, b1, w2, b2, w3, b3, *, block_batch=2048):
    """mu = Tanh(Tanh(Tanh(x@W1+b1)@W2+b2)@W3+b3) in one Pallas call.

    Grid iterates over batch tiles (Pallas handles the ragged last tile);
    weights/biases stay VMEM-resident across all steps via constant index_maps.
    """
    B, in_dim = x.shape
    hidden = w1.shape[1]
    out_dim = w3.shape[1]

    tb = _choose_tb(B, block_batch)
    grid = (pl.cdiv(B, tb),)

    # Constant index_map -> same (full) block every step -> weights stay in VMEM.
    const = lambda a: pl.BlockSpec(a.shape, lambda i, _n=a.ndim: (0,) * _n)

    bytes_in = int(x.size) * x.dtype.itemsize + sum(
        int(a.size) * a.dtype.itemsize for a in (w1, b1, w2, b2, w3, b3)
    )
    cost = pl.CostEstimate(
        flops=2 * B * (in_dim * hidden + hidden * hidden + hidden * out_dim),
        transcendentals=B * (2 * hidden + out_dim),
        bytes_accessed=bytes_in + B * out_dim * 4,
    )

    return pl.pallas_call(
        _bnn_mlp_kernel,
        out_shape=jax.ShapeDtypeStruct((B, out_dim), jnp.float32),
        grid=grid,
        in_specs=[
            pl.BlockSpec((tb, in_dim), lambda i: (i, 0)),  # x: streamed by batch tile
            const(w1), const(b1), const(w2), const(b2), const(w3), const(b3),
        ],
        # Natural (tb, out_dim) store: full-array last dim, no lane padding,
        # no oversized HBM writeback, no wrapper-side slice.
        out_specs=pl.BlockSpec((tb, out_dim), lambda i: (i, 0)),
        compiler_params=pltpu.CompilerParams(
            # Batch tiles are independent -> v7x's 2 TensorCores split the grid.
            dimension_semantics=("parallel",),
        ),
        cost_estimate=cost,
    )(x, w1, b1, w2, b2, w3, b3)


def init_bnn_params(key, input_dim, hidden, output_dim):
    """Xavier-uniform weights, zero biases (matches initialize_weights()).
    Weights stored as (in, out) and cast to bf16 ONCE here (MXU-native on
    v5e/v6e/v7x); biases stay f32 (bias-add/tanh run in f32 in-kernel)."""
    k1, k2, k3 = jax.random.split(key, 3)

    def xavier(k, fan_in, fan_out):
        bound = math.sqrt(6.0 / (fan_in + fan_out))
        w = jax.random.uniform(
            k, (fan_in, fan_out), dtype=jnp.float32, minval=-bound, maxval=bound
        )
        return w.astype(jnp.bfloat16)

    w1 = xavier(k1, input_dim, hidden)
    b1 = jnp.zeros((1, hidden), jnp.float32)
    w2 = xavier(k2, hidden, hidden)
    b2 = jnp.zeros((1, hidden), jnp.float32)
    w3 = xavier(k3, hidden, output_dim)
    b3 = jnp.zeros((1, output_dim), jnp.float32)
    return (w1, b1, w2, b2, w3, b3)


def _bnn_forward(x, params, n_observation, rng_key):
    """Full BNN.forward: (mu, sigma).  One jitted dispatch: the Gamma draw for
    sigma (data-independent of mu) compiles into the same XLA program as the
    Pallas call, so it overlaps instead of adding a second serial launch."""
    mu = bnn_mu_pallas(x, *params)
    # sigma_{i,j} ~ Gamma(shape = 12/sqrt(n_observation), rate = 1)
    # NOTE: the PyTorch module raises ZeroDivisionError for n_observation == 0;
    # we require n_observation > 0 here.
    # TODO(synk): no clean in-kernel Gamma sampler (needs rejection sampling);
    # sigma uses jax.random.gamma fused in the same jit instead.
    gamma_shape = 12.0 / math.sqrt(n_observation)
    sigma = jax.random.gamma(rng_key, a=gamma_shape, shape=mu.shape, dtype=jnp.float32)
    return mu, sigma


bnn_forward = jax.jit(_bnn_forward, static_argnums=(2,))


def bnn_mu_ref(x, params):
    """Pure-JAX reference mirroring the kernel's precision (bf16 matmul inputs,
    f32 accumulation, f32 bias/tanh)."""
    w1, b1, w2, b2, w3, b3 = params
    h = jnp.tanh(jnp.dot(x.astype(w1.dtype), w1, preferred_element_type=jnp.float32) + b1)
    h = jnp.tanh(jnp.dot(h.astype(w2.dtype), w2, preferred_element_type=jnp.float32) + b2)
    return jnp.tanh(jnp.dot(h.astype(w3.dtype), w3, preferred_element_type=jnp.float32) + b3)


def bnn_mu_ref_f32(x, params):
    """Full-f32 semantic reference (loose-tolerance sanity check of bf16 path)."""
    w1, b1, w2, b2, w3, b3 = (p.astype(jnp.float32) for p in params)
    h = jnp.tanh(x @ w1 + b1)
    h = jnp.tanh(h @ w2 + b2)
    return jnp.tanh(h @ w3 + b3)


if __name__ == "__main__":
    key = jax.random.PRNGKey(0)
    k_x, k_p, k_sig = jax.random.split(key, 3)

    batch = 8
    input_dim = 32
    hidden = 32
    output_dim = 4
    n_observation = 4  # must be > 0 (see note above)

    x = jax.random.normal(k_x, (batch, input_dim), dtype=jnp.float32)
    params = init_bnn_params(k_p, input_dim, hidden, output_dim)

    mu, sigma = bnn_forward(x, params, n_observation, k_sig)
    jax.block_until_ready((mu, sigma))

    # correctness of the Pallas hot path against pure-JAX references
    assert mu.shape == (batch, output_dim)
    assert sigma.shape == (batch, output_dim)
    assert jnp.allclose(mu, bnn_mu_ref(x, params), atol=1e-4, rtol=1e-4)
    assert jnp.allclose(mu, bnn_mu_ref_f32(x, params), atol=5e-2, rtol=5e-2)
    assert bool(jnp.all(sigma > 0.0))

    # ragged, multi-grid-step batch path (partial last tile, no wrapper pad)
    batch2 = 300
    x2 = jax.random.normal(jax.random.PRNGKey(7), (batch2, input_dim), jnp.float32)
    mu2 = bnn_mu_pallas(x2, *params, block_batch=128)
    jax.block_until_ready(mu2)
    assert mu2.shape == (batch2, output_dim)
    assert jnp.allclose(mu2, bnn_mu_ref(x2, params), atol=1e-4, rtol=1e-4)

    # large-batch path: default big tile, grid capped so >=2 parallel steps
    batch3 = 4096
    x3 = jax.random.normal(jax.random.PRNGKey(11), (batch3, input_dim), jnp.float32)
    mu3 = bnn_mu_pallas(x3, *params)
    jax.block_until_ready(mu3)
    assert mu3.shape == (batch3, output_dim)
    assert jnp.allclose(mu3, bnn_mu_ref(x3, params), atol=1e-4, rtol=1e-4)

    print("KERNEL_OK")
</pallas_src>

<mosaic_0001>
module attributes {stable_mosaic.version = 11 : i64} {
  func.func @_bnn_mlp_kernel(%arg0: i32, %arg1: memref<8x32xf32, #tpu.memory_space<vmem>>, %arg2: memref<32x32xbf16, #tpu.memory_space<vmem>>, %arg3: memref<1x32xf32, #tpu.memory_space<vmem>>, %arg4: memref<32x32xbf16, #tpu.memory_space<vmem>>, %arg5: memref<1x32xf32, #tpu.memory_space<vmem>>, %arg6: memref<32x4xbf16, #tpu.memory_space<vmem>>, %arg7: memref<1x4xf32, #tpu.memory_space<vmem>>, %arg8: memref<8x4xf32, #tpu.memory_space<vmem>>) attributes {dimension_semantics = [#tpu.dimension_semantics<parallel>], iteration_bounds = array<i64: 1>, scalar_prefetch = 0 : i64, scratch_operands = 0 : i64, tpu.core_type = #tpu.core_type<tc>, window_params = [{transform_indices = @transform_0, window_bounds = array<i64: 8, 32>}, {pipeline_mode = #tpu.pipeline_mode<synchronous>, transform_indices = @transform_1, window_bounds = array<i64: 32, 32>}, {pipeline_mode = #tpu.pipeline_mode<synchronous>, transform_indices = @transform_2, window_bounds = array<i64: 1, 32>}, {pipeline_mode = #tpu.pipeline_mode<synchronous>, transform_indices = @transform_3, window_bounds = array<i64: 32, 32>}, {pipeline_mode = #tpu.pipeline_mode<synchronous>, transform_indices = @transform_4, window_bounds = array<i64: 1, 32>}, {pipeline_mode = #tpu.pipeline_mode<synchronous>, transform_indices = @transform_5, window_bounds = array<i64: 32, 4>}, {pipeline_mode = #tpu.pipeline_mode<synchronous>, transform_indices = @transform_6, window_bounds = array<i64: 1, 4>}, {transform_indices = @transform_7, window_bounds = array<i64: 8, 4>}]} {
    %c0 = arith.constant 0 : index
    %c0_0 = arith.constant 0 : index
    %0 = vector.load %arg1[%c0, %c0_0] : memref<8x32xf32, #tpu.memory_space<vmem>>, vector<8x32xf32>
    %1 = arith.truncf %0 : vector<8x32xf32> to vector<8x32xbf16>
    %c0_1 = arith.constant 0 : index
    %c0_2 = arith.constant 0 : index
    %2 = vector.load %arg2[%c0_1, %c0_2] : memref<32x32xbf16, #tpu.memory_space<vmem>>, vector<32x32xbf16>
    %cst = arith.constant dense<0.000000e+00> : vector<8x32xf32>
    %3 = tpu.matmul %1, %2, %cst {dimension_numbers = #tpu.dot_dimension_numbers<[1], [0], [0], [1], [0, 0, 1, 1], [], []>} : vector<8x32xbf16>, vector<32x32xbf16>, vector<8x32xf32> -> vector<8x32xf32>
    %c0_3 = arith.constant 0 : index
    %c0_4 = arith.constant 0 : index
    %4 = vector.load %arg3[%c0_3, %c0_4] : memref<1x32xf32, #tpu.memory_space<vmem>>, vector<1x32xf32>
    %5 = vector.broadcast %4 : vector<1x32xf32> to vector<8x32xf32>
    %6 = arith.addf %3, %5 : vector<8x32xf32>
    %7 = math.tanh %6 : vector<8x32xf32>
    %8 = arith.truncf %7 : vector<8x32xf32> to vector<8x32xbf16>
    %c0_5 = arith.constant 0 : index
    %c0_6 = arith.constant 0 : index
    %9 = vector.load %arg4[%c0_5, %c0_6] : memref<32x32xbf16, #tpu.memory_space<vmem>>, vector<32x32xbf16>
    %cst_7 = arith.constant dense<0.000000e+00> : vector<8x32xf32>
    %10 = tpu.matmul %8, %9, %cst_7 {dimension_numbers = #tpu.dot_dimension_numbers<[1], [0], [0], [1], [0, 0, 1, 1], [], []>} : vector<8x32xbf16>, vector<32x32xbf16>, vector<8x32xf32> -> vector<8x32xf32>
    %c0_8 = arith.constant 0 : index
    %c0_9 = arith.constant 0 : index
    %11 = vector.load %arg5[%c0_8, %c0_9] : memref<1x32xf32, #tpu.memory_space<vmem>>, vector<1x32xf32>
    %12 = vector.broadcast %11 : vector<1x32xf32> to vector<8x32xf32>
    %13 = arith.addf %10, %12 : vector<8x32xf32>
    %14 = math.tanh %13 : vector<8x32xf32>
    %15 = arith.truncf %14 : vector<8x32xf32> to vector<8x32xbf16>
    %c0_10 = arith.constant 0 : index
    %c0_11 = arith.constant 0 : index
    %16 = vector.load %arg6[%c0_10, %c0_11] : memref<32x4xbf16, #tpu.memory_space<vmem>>, vector<32x4xbf16>
    %cst_12 = arith.constant dense<0.000000e+00> : vector<8x4xf32>
    %17 = tpu.matmul %15, %16, %cst_12 {dimension_numbers = #tpu.dot_dimension_numbers<[1], [0], [0], [1], [0, 0, 1, 1], [], []>} : vector<8x32xbf16>, vector<32x4xbf16>, vector<8x4xf32> -> vector<8x4xf32>
    %c0_13 = arith.constant 0 : index
    %c0_14 = arith.constant 0 : index
    %18 = vector.load %arg7[%c0_13, %c0_14] : memref<1x4xf32, #tpu.memory_space<vmem>>, vector<1x4xf32>
    %19 = vector.broadcast %18 : vector<1x4xf32> to vector<8x4xf32>
    %20 = arith.addf %17, %19 : vector<8x4xf32>
    %21 = math.tanh %20 : vector<8x4xf32>
    %c0_15 = arith.constant 0 : index
    %c0_16 = arith.constant 0 : index
    %22 = vector.load %arg8[%c0_15, %c0_16] : memref<8x4xf32, #tpu.memory_space<vmem>>, vector<8x4xf32>
    tpu.vector_store %arg8[%c0_15, %c0_16], %21 {strides = array<i32>} : memref<8x4xf32, #tpu.memory_space<vmem>>, vector<8x4xf32>,
    return
  }
  func.func @transform_0(%arg0: i32) -> (i32, i32) {
    %c0_i32 = arith.constant 0 : i32
    %c0_i32_0 = arith.constant 0 : i32
    return %arg0, %c0_i32 : i32, i32
  }
  func.func @transform_1(%arg0: i32) -> (i32, i32) {
    %c0_i32 = arith.constant 0 : i32
    %c0_i32_0 = arith.constant 0 : i32
    %c0_i32_1 = arith.constant 0 : i32
    return %c0_i32, %c0_i32_0 : i32, i32
  }
  func.func @transform_2(%arg0: i32) -> (i32, i32) {
    %c0_i32 = arith.constant 0 : i32
    %c0_i32_0 = arith.constant 0 : i32
    %c0_i32_1 = arith.constant 0 : i32
    return %c0_i32, %c0_i32_0 : i32, i32
  }
  func.func @transform_3(%arg0: i32) -> (i32, i32) {
    %c0_i32 = arith.constant 0 : i32
    %c0_i32_0 = arith.constant 0 : i32
    %c0_i32_1 = arith.constant 0 : i32
    return %c0_i32, %c0_i32_0 : i32, i32
  }
  func.func @transform_4(%arg0: i32) -> (i32, i32) {
    %c0_i32 = arith.constant 0 : i32
    %c0_i32_0 = arith.constant 0 : i32
    %c0_i32_1 = arith.constant 0 : i32
    return %c0_i32, %c0_i32_0 : i32, i32
  }
  func.func @transform_5(%arg0: i32) -> (i32, i32) {
    %c0_i32 = arith.constant 0 : i32
    %c0_i32_0 = arith.constant 0 : i32
    %c0_i32_1 = arith.constant 0 : i32
    return %c0_i32, %c0_i32_0 : i32, i32
  }
  func.func @transform_6(%arg0: i32) -> (i32, i32) {
    %c0_i32 = arith.constant 0 : i32
    %c0_i32_0 = arith.constant 0 : i32
    %c0_i32_1 = arith.constant 0 : i32
    return %c0_i32, %c0_i32_0 : i32, i32
  }
  func.func @transform_7(%arg0: i32) -> (i32, i32) {
    %c0_i32 = arith.constant 0 : i32
    %c0_i32_0 = arith.constant 0 : i32
    return %arg0, %c0_i32 : i32, i32
  }
}

</mosaic_0001>

<llo_original>
// kernel: _bnn_forward.1
$region0: #{_bnn_forward.1}
  #allocation0 [shape = 'u32[]', space=smem, size = 0x4, offset = 0x4, fixed_abs, tag = 'smem constant byte address 0x4 - core index']
  #allocation1 [shape = 'u32[144,128]{1,0:T(1,128)}', space=vmem, size = 0x12000, scoped, tag = 'internal scratch']
  %s0 = inlined_call_operand.vmem [shape: f32[8,32], index: 0, kind: input, shape index: {}]
  %s1 = inlined_call_operand.vmem [shape: bf16[32,32], index: 1, kind: input, shape index: {}]
  %s2 = inlined_call_operand.vmem [shape: f32[1,32], index: 2, kind: input, shape index: {}]
  %s3 = inlined_call_operand.hbm [shape: bf16[32,32], index: 3, kind: input, shape index: {}]
  %s4 = inlined_call_operand.vmem [shape: f32[1,32], index: 4, kind: input, shape index: {}]
  %s5 = inlined_call_operand.vmem [shape: bf16[32,4], index: 5, kind: input, shape index: {}]
  %s6 = inlined_call_operand.vmem [shape: f32[1,4], index: 6, kind: input, shape index: {}]
  %s7 = inlined_call_operand.vmem [shape: f32[8,4], index: 7, kind: output, shape index: {}]
  %s8 = sld [smem:[#allocation0]]
  $region42: #{_bnn_forward.1} parent=0
    _
  %s10 = ssub.s32 1, %s8
  %s11 = scalar_select 0, %s10, %s8
  $region1: #{_bnn_forward.1} parent=0
    #allocation2 [shape = 'u8[8192]{0}', space=vmem, size = 0x2000, scoped, tag = 'input window, operand 3, single buffered']
    #allocation3 [shape = 's32[1]{0}', space=sflag, size = 0x4, scoped, tag = 'scoped memory for _bnn_forward.1']
    %12 = vsyncpa [#allocation3], 0
    // Predicated region
    $region2: #{_bnn_forward.1} parent=1 // pred_check
      _
    $region3: #{_bnn_forward.1} parent=1 // pred_check_branch
      %14 = sbr.rel (0) target = $region5
    $region4: #{_bnn_forward.1} parent=1 // pred_region
      _
    $region5: #{_bnn_forward.1} parent=1 // pred_fallthru
      _
    // Predicated region
    $region6: #{_bnn_forward.1} parent=1 // pred_check
      _
    $region7: #{_bnn_forward.1} parent=1 // pred_check_branch
      %16 = sbr.rel (0) target = $region9
    $region8: #{_bnn_forward.1} parent=1 // pred_region
      _
    $region9: #{_bnn_forward.1} parent=1 // pred_fallthru
      _
    // Predicated region
    $region10: #{_bnn_forward.1} parent=1 // pred_check
      _
    $region11: #{_bnn_forward.1} parent=1 // pred_check_branch
      %18 = sbr.rel (0) target = $region13
    $region12: #{_bnn_forward.1} parent=1 // pred_region
      _
    $region13: #{_bnn_forward.1} parent=1 // pred_fallthru
      _
    // Predicated region
    $region14: #{_bnn_forward.1} parent=1 // pred_check
      _
    $region15: #{_bnn_forward.1} parent=1 // pred_check_branch
      %20 = sbr.rel (0) target = $region17
    $region16: #{_bnn_forward.1} parent=1 // pred_region
      %s22 = ssub.s32 256, 256
      %23 = vsyncadd [#allocation3], %s22
      %s24 = sshll.u32 [#allocation2], 4
      %s25 = int_to_ptr.vmem [resolvable:$true] %s24
      %30 = dma.hbm_to_vmem [thread:$0]  %s3, 256, %s25, [#allocation3], 64, 64, 4
    $region17: #{_bnn_forward.1} parent=1 // pred_fallthru
      _
    // Predicated region
    $region18: #{_bnn_forward.1} parent=1 // pred_check
      _
    $region19: #{_bnn_forward.1} parent=1 // pred_check_branch
      %32 = sbr.rel (0) target = $region21
    $region20: #{_bnn_forward.1} parent=1 // pred_region
      _
    $region21: #{_bnn_forward.1} parent=1 // pred_fallthru
      _
    // Predicated region
    $region22: #{_bnn_forward.1} parent=1 // pred_check
      _
    $region23: #{_bnn_forward.1} parent=1 // pred_check_branch
      %34 = sbr.rel (0) target = $region25
    $region24: #{_bnn_forward.1} parent=1 // pred_region
      _
    $region25: #{_bnn_forward.1} parent=1 // pred_fallthru
      _
    // Predicated region
    $region26: #{_bnn_forward.1} parent=1 // pred_check
      _
    $region27: #{_bnn_forward.1} parent=1 // pred_check_branch
      %36 = sbr.rel (0) target = $region29
    $region28: #{_bnn_forward.1} parent=1 // pred_region
      _
    $region29: #{_bnn_forward.1} parent=1 // pred_fallthru
      _
    // Predicated region
    $region30: #{_bnn_forward.1} parent=1 // pred_check
      _
    $region31: #{_bnn_forward.1} parent=1 // pred_check_branch
      %38 = sbr.rel (0) target = $region33
    $region32: #{_bnn_forward.1} parent=1 // pred_region
      %39 = dma.done [#allocation3], 256
    $region33: #{_bnn_forward.1} parent=1 // pred_fallthru
      _
    %v41 = vld [vmem:[%s0] sm:$0xff]
    %v42 = vpack.c.bf16 %v41, %v41
    %v43 = vld [vmem:[%s1] sm:$0xf]
    %v44 = vld [vmem:[%s1 + $0x4] sm:$0xf]
    %v45 = vld [vmem:[%s1 + $0x8] sm:$0xf]
    %v46 = vld [vmem:[%s1 + $0xc] sm:$0xf]
    %v47 = vld [vmem:[%s2] sm:$0x1]
    %v49 = vlaneseq
    %v50 = vshrl.u32 %v49, 7
    %v51 = vsub.s32 0, %v50
    %v52 = vrot.slane %v47, %v51
    %v58 = vunpack.c.l.b16 %v43
    %v59 = vunpack.c.l.b16 %v44
    %v60 = vunpack.c.l.b16 %v45
    %v61 = vunpack.c.l.b16 %v46
    %v62 = vpack.c.b16 %v59, %v58
    %v63 = vpack.c.b16 %v61, %v60
    %vm66 = vcmask 261120
    %v68 = vsel %vm66, %v42, 0
    %70 = vmatprep.subr.bf16.mxu0 0
    %71 = vmatpush1.bf16.msra.mxu0 0
    %72 = vmatprep.subr.bf16.mxu0 0
    %73 = vmatpush1.bf16.msra.mxu0 0
    %74 = vmatprep.subr.bf16.mxu0 0
    %75 = vmatpush1.bf16.msra.mxu0 0
    %76 = vmatprep.subr.bf16.mxu0 0
    %77 = vmatpush1.bf16.msra.mxu0 0
    %78 = vmatprep.subr.bf16.mxu0 0
    %79 = vmatpush1.bf16.msra.mxu0 0
    %80 = vmatprep.subr.bf16.mxu0 0
    %81 = vmatpush1.bf16.msra.mxu0 0
    %82 = vmatprep.subr.bf16.mxu0 0
    %83 = vmatpush1.bf16.msra.mxu0 %v63
    %84 = vmatprep.subr.bf16.mxu0 0
    %85 = vmatpush1.bf16.msra.mxu0 %v62
    %86 = vmatprep.subr.bf16.mxu0 0
    %87 = vmatpush2.bf16.msra.mxu0 0
    %88 = vmatprep.subr.bf16.mxu0 0
    %89 = vmatpush2.bf16.msra.mxu0 0
    %90 = vmatprep.subr.bf16.mxu0 0
    %91 = vmatpush2.bf16.msra.mxu0 0
    %92 = vmatprep.subr.bf16.mxu0 0
    %93 = vmatpush2.bf16.msra.mxu0 0
    %94 = vmatprep.subr.bf16.mxu0 0
    %95 = vmatpush2.bf16.msra.mxu0 0
    %96 = vmatprep.subr.bf16.mxu0 0
    %97 = vmatpush2.bf16.msra.mxu0 0
    %98 = vmatprep.subr.bf16.mxu0 0
    %99 = vmatpush2.bf16.msra.mxu0 0
    %100 = vmatprep.subr.bf16.mxu0 0
    %101 = vmatpush2.bf16.msra.mxu0 0
    %102 = vmatprep.mubr.bf16.mxu0 0
    %103 = vmatmul.mubr.bf16.gmra.mxu0 %v68
    %v104 = vpop.f32.mrf.mxu0
    %v105 = vadd.f32 %v52, %v104
    %v106 = vpop.f32.mrf.mxu0
    %v107 = vpop.f32.mrf.mxu0
    %v108 = vpop.f32.mrf.mxu0
    %109 = vdwg.mxu0
    %v110 = vtanh.pop %v105
    %v111 = vpack.c.bf16 %v110, %v110
    %v112 = vld [vmem:[#allocation2] sm:$0xf]
    %v113 = vld [vmem:[#allocation2 + $0x4] sm:$0xf]
    %v114 = vld [vmem:[#allocation2 + $0x8] sm:$0xf]
    %v115 = vld [vmem:[#allocation2 + $0xc] sm:$0xf]
    %v116 = vld [vmem:[%s4] sm:$0x1]
    %v118 = vlaneseq
    %v119 = vshrl.u32 %v118, 7
    %v120 = vsub.s32 0, %v119
    %v121 = vrot.slane %v116, %v120
    %v127 = vunpack.c.l.b16 %v112
    %v128 = vunpack.c.l.b16 %v113
    %v129 = vunpack.c.l.b16 %v114
    %v130 = vunpack.c.l.b16 %v115
    %v131 = vpack.c.b16 %v128, %v127
    %v132 = vpack.c.b16 %v130, %v129
    %v136 = vsel %vm66, %v111, 0
    %138 = vmatprep.subr.bf16.mxu0 0
    %139 = vmatpush1.bf16.msra.mxu0 0
    %140 = vmatprep.subr.bf16.mxu0 0
    %141 = vmatpush1.bf16.msra.mxu0 0
    %142 = vmatprep.subr.bf16.mxu0 0
    %143 = vmatpush1.bf16.msra.mxu0 0
    %144 = vmatprep.subr.bf16.mxu0 0
    %145 = vmatpush1.bf16.msra.mxu0 0
    %146 = vmatprep.subr.bf16.mxu0 0
    %147 = vmatpush1.bf16.msra.mxu0 0
    %148 = vmatprep.subr.bf16.mxu0 0
    %149 = vmatpush1.bf16.msra.mxu0 0
    %150 = vmatprep.subr.bf16.mxu0 0
    %151 = vmatpush1.bf16.msra.mxu0 %v132
    %152 = vmatprep.subr.bf16.mxu0 0
    %153 = vmatpush1.bf16.msra.mxu0 %v131
    %154 = vmatprep.subr.bf16.mxu0 0
    %155 = vmatpush2.bf16.msra.mxu0 0
    %156 = vmatprep.subr.bf16.mxu0 0
    %157 = vmatpush2.bf16.msra.mxu0 0
    %158 = vmatprep.subr.bf16.mxu0 0
    %159 = vmatpush2.bf16.msra.mxu0 0
    %160 = vmatprep.subr.bf16.mxu0 0
    %161 = vmatpush2.bf16.msra.mxu0 0
    %162 = vmatprep.subr.bf16.mxu0 0
    %163 = vmatpush2.bf16.msra.mxu0 0
    %164 = vmatprep.subr.bf16.mxu0 0
    %165 = vmatpush2.bf16.msra.mxu0 0
    %166 = vmatprep.subr.bf16.mxu0 0
    %167 = vmatpush2.bf16.msra.mxu0 0
    %168 = vmatprep.subr.bf16.mxu0 0
    %169 = vmatpush2.bf16.msra.mxu0 0
    %170 = vmatprep.mubr.bf16.mxu0 0
    %171 = vmatmul.mubr.bf16.gmra.mxu0 %v136
    %v172 = vpop.f32.mrf.mxu0
    %v173 = vadd.f32 %v121, %v172
    %v174 = vpop.f32.mrf.mxu0
    %v175 = vpop.f32.mrf.mxu0
    %v176 = vpop.f32.mrf.mxu0
    %177 = vdwg.mxu0
    %v178 = vtanh.pop %v173
    %v179 = vpack.c.bf16 %v178, %v178
    %v180 = vld [vmem:[%s5] sm:$0xf]
    %v181 = vld [vmem:[%s5 + $0x4] sm:$0xf]
    %v182 = vld [vmem:[%s5 + $0x8] sm:$0xf]
    %v183 = vld [vmem:[%s5 + $0xc] sm:$0xf]
    %v184 = vld [vmem:[%s6] sm:$0x1]
    %v186 = vlaneseq
    %v187 = vshrl.u32 %v186, 7
    %v188 = vsub.s32 0, %v187
    %v189 = vrot.slane %v184, %v188
    %v195 = vunpack.c.l.b16 %v180
    %v196 = vunpack.c.l.b16 %v181
    %v197 = vunpack.c.l.b16 %v182
    %v198 = vunpack.c.l.b16 %v183
    %v199 = vpack.c.b16 %v196, %v195
    %v200 = vpack.c.b16 %v198, %v197
    %v204 = vsel %vm66, %v179, 0
    %206 = vmatprep.subr.bf16.mxu0 0
    %207 = vmatpush1.bf16.msra.mxu0 0
    %208 = vmatprep.subr.bf16.mxu0 0
    %209 = vmatpush1.bf16.msra.mxu0 0
    %210 = vmatprep.subr.bf16.mxu0 0
    %211 = vmatpush1.bf16.msra.mxu0 0
    %212 = vmatprep.subr.bf16.mxu0 0
    %213 = vmatpush1.bf16.msra.mxu0 0
    %214 = vmatprep.subr.bf16.mxu0 0
    %215 = vmatpush1.bf16.msra.mxu0 0
    %216 = vmatprep.subr.bf16.mxu0 0
    %217 = vmatpush1.bf16.msra.mxu0 0
    %218 = vmatprep.subr.bf16.mxu0 0
    %219 = vmatpush1.bf16.msra.mxu0 %v200
    %220 = vmatprep.subr.bf16.mxu0 0
    %221 = vmatpush1.bf16.msra.mxu0 %v199
    %222 = vmatprep.subr.bf16.mxu0 0
    %223 = vmatpush2.bf16.msra.mxu0 0
    %224 = vmatprep.subr.bf16.mxu0 0
    %225 = vmatpush2.bf16.msra.mxu0 0
    %226 = vmatprep.subr.bf16.mxu0 0
    %227 = vmatpush2.bf16.msra.mxu0 0
    %228 = vmatprep.subr.bf16.mxu0 0
    %229 = vmatpush2.bf16.msra.mxu0 0
    %230 = vmatprep.subr.bf16.mxu0 0
    %231 = vmatpush2.bf16.msra.mxu0 0
    %232 = vmatprep.subr.bf16.mxu0 0
    %233 = vmatpush2.bf16.msra.mxu0 0
    %234 = vmatprep.subr.bf16.mxu0 0
    %235 = vmatpush2.bf16.msra.mxu0 0
    %236 = vmatprep.subr.bf16.mxu0 0
    %237 = vmatpush2.bf16.msra.mxu0 0
    %238 = vmatprep.mubr.bf16.mxu0 0
    %239 = vmatmul.mubr.bf16.gmra.mxu0 %v204
    %v240 = vpop.f32.mrf.mxu0
    %v241 = vadd.f32 %v189, %v240
    %v242 = vpop.f32.mrf.mxu0
    %v243 = vpop.f32.mrf.mxu0
    %v244 = vpop.f32.mrf.mxu0
    %245 = vdwg.mxu0
    %v246 = vtanh.pop %v241
    %vm247 = vcmask 31744
    %248 = vst.msk [vmem:[%s7] sm:$0xff] %vm247, %v246
    // Predicated region
    $region34: #{_bnn_forward.1} parent=1 // pred_check
      _
    $region35: #{_bnn_forward.1} parent=1 // pred_check_branch
      %250 = sbr.rel (0) target = $region37
    $region36: #{_bnn_forward.1} parent=1 // pred_region
      _
    $region37: #{_bnn_forward.1} parent=1 // pred_fallthru
      _
    // Predicated region
    $region38: #{_bnn_forward.1} parent=1 // pred_check
      _
    $region39: #{_bnn_forward.1} parent=1 // pred_check_branch
      %252 = sbr.rel (0) target = $region41
    $region40: #{_bnn_forward.1} parent=1 // pred_region
      _
    $region41: #{_bnn_forward.1} parent=1 // pred_fallthru
      _
    %253 = vsyncpa [#allocation3], 1

</llo_original>
